<compile_context>
chip_gen: v7x
topology: tpu7x:2x2x1
jax: 0.10.0
libtpu: 0.0.40
codegen_flags: <defaults>
</compile_context>

<pallas_src>
import functools

import jax
import jax.numpy as jnp
from jax.experimental import pallas as pl
from jax.experimental.pallas import tpu as pltpu


# ----------------------------------------------------------------------------
# Kernel: one grid step handles TB images.
#   p_ref   (TB, S, Cp)  bf16   zero-row-padded patches (row 0 of each image = 0)
#   w_ref   (Cp, D)      bf16   conv weight as matmul RHS (resident)
#   add_ref (1, S, D)    f32    pos + [cls | conv-bias] per row (resident)
#   out_ref (TB, S, D)   f32
# ----------------------------------------------------------------------------
def _embed_kernel(p_ref, w_ref, add_ref, out_ref, *, tb):
    w = w_ref[...]                       # (Cp, D) bf16
    add = add_ref[0]                     # (S, D)  f32
    # Unrolled loop over the images of this tile: each iteration is one 2-D MXU
    # matmul and one aligned, full-slab (S, D) store (no sublane-offset-1
    # masked stores, no tile-crossing reshape).
    for b in range(tb):
        emb = jnp.dot(p_ref[b], w, preferred_element_type=jnp.float32)  # (S, D) f32
        out_ref[b] = (emb + add).astype(out_ref.dtype)
    # TODO(synk): dropout with p > 0 not implemented (module default p = 0).


# ----------------------------------------------------------------------------
# Glue: NCHW -> (B, P, C*ps*ps), channel-major per patch, matching the
# reshaped Conv2d weight (D, C, ps, ps).reshape(D, -1).T
# ----------------------------------------------------------------------------
def extract_patches(x, ps):
    B, C, H, W = x.shape
    Hp, Wp = H // ps, W // ps
    x = x.reshape(B, C, Hp, ps, Wp, ps)
    x = x.transpose(0, 2, 4, 1, 3, 5)            # (B, Hp, Wp, C, ps, ps)
    return x.reshape(B, Hp * Wp, C * ps * ps)
    # TODO(synk): this transpose is an XLA HBM round-trip; fusing it into the
    # pallas_call input DMA (allow_input_fusion / manual strided copies) would
    # cut total HBM traffic further.


def _pick_batch_tile(B, S, Cp, D, budget_bytes=24 << 20):
    """Largest divisor of B whose double-buffered per-step footprint fits."""
    per_image = 2 * (S * Cp * 2 + S * D * 4)     # bf16 input + f32 output, x2 buffers
    tb = max(1, min(B, budget_bytes // max(per_image, 1)))
    while B % tb:
        tb -= 1
    return tb


# ----------------------------------------------------------------------------
# Public forward: matches Embd.forward (dropout = 0)
# ----------------------------------------------------------------------------
@functools.partial(jax.jit, static_argnames=("patch_size",))
def embd_forward(x, patch_w, patch_b, cls_token, position, *, patch_size):
    B = x.shape[0]
    D = patch_w.shape[1]

    patches = extract_patches(x, patch_size)                 # (B, P, Cp0) f32
    P, Cp0 = patches.shape[1], patches.shape[2]
    S = P + 1

    # bf16 matmul inputs; K padded to a multiple of 128; one zero row prepended
    # per image so the cls slot comes out of the same matmul and the store is a
    # single aligned slab.
    Cp = ((Cp0 + 127) // 128) * 128
    patches = patches.astype(jnp.bfloat16)
    patches = jnp.pad(patches, ((0, 0), (1, 0), (0, Cp - Cp0)))        # (B, S, Cp)
    w = jnp.pad(patch_w.astype(jnp.bfloat16), ((0, Cp - Cp0), (0, 0)))  # (Cp, D)

    # Resident per-row additive table: row 0 = cls + pos[0], rows 1.. = bias + pos[1:]
    bias_rows = jnp.broadcast_to(
        patch_b.reshape(1, 1, D).astype(jnp.float32), (1, P, D))
    add_rows = position.astype(jnp.float32) + jnp.concatenate(
        [cls_token.astype(jnp.float32), bias_rows], axis=1)            # (1, S, D)

    tb = _pick_batch_tile(B, S, Cp, D)
    grid = (B // tb,)

    flops = int(2 * B * S * Cp * D)
    bytes_accessed = int(B * S * Cp * 2 + Cp * D * 2 + S * D * 4 + B * S * D * 4)

    return pl.pallas_call(
        functools.partial(_embed_kernel, tb=tb),
        out_shape=jax.ShapeDtypeStruct((B, S, D), jnp.float32),
        grid=grid,
        in_specs=[
            pl.BlockSpec((tb, S, Cp), lambda i: (i, 0, 0)),   # patch tile (pipelined)
            pl.BlockSpec((Cp, D), lambda i: (0, 0)),          # weight (resident)
            pl.BlockSpec((1, S, D), lambda i: (0, 0, 0)),     # add table (resident)
        ],
        out_specs=pl.BlockSpec((tb, S, D), lambda i: (i, 0, 0)),
        compiler_params=pltpu.CompilerParams(
            dimension_semantics=("parallel",),
            vmem_limit_bytes=48 * 1024 * 1024,
        ),
        cost_estimate=pl.CostEstimate(
            flops=flops, transcendentals=0, bytes_accessed=bytes_accessed),
    )(patches, w, add_rows)


# ----------------------------------------------------------------------------
if __name__ == "__main__":
    # Small deterministic config: images (2, 4, 16, 16), patch 4 -> 16 patches,
    # embd_dim 128 (lane-aligned), dropout = 0 (module default).
    B, C, H, W = 2, 4, 16, 16
    patch_size = 4
    num_patch = (H // patch_size) * (W // patch_size)          # 16
    embd_dim = 128
    S = num_patch + 1

    key = jax.random.PRNGKey(0)
    kx, kw, kb, kc, kp = jax.random.split(key, 5)
    x = jax.random.normal(kx, (B, C, H, W), dtype=jnp.float32)          # NCHW input

    # Parameters in PyTorch shapes, then reshaped for `patches @ W`.
    conv_w = (0.05 * jax.random.normal(kw, (embd_dim, C, patch_size, patch_size))
              ).astype(jnp.float32)                                     # (D, C, ps, ps)
    patch_w = conv_w.reshape(embd_dim, -1).T                            # (Cp, D)
    patch_b = (0.05 * jax.random.normal(kb, (1, embd_dim))).astype(jnp.float32)
    cls_token = jax.random.normal(kc, (1, 1, embd_dim)).astype(jnp.float32)
    position = jax.random.normal(kp, (1, S, embd_dim)).astype(jnp.float32)

    out = jax.block_until_ready(
        embd_forward(x, patch_w, patch_b, cls_token, position, patch_size=patch_size))

    # Pure-JAX reference (independent strided-conv path) for a sanity check.
    ref_conv = jax.lax.conv_general_dilated(
        x, conv_w, window_strides=(patch_size, patch_size), padding="VALID",
        dimension_numbers=("NCHW", "OIHW", "NCHW"),
        precision=jax.lax.Precision.HIGHEST)                            # (B, D, Hp, Wp)
    ref = ref_conv.reshape(B, embd_dim, num_patch).transpose(0, 2, 1)   # (B, P, D)
    ref = ref + patch_b.reshape(1, 1, embd_dim)
    ref = jnp.concatenate(
        [jnp.broadcast_to(cls_token, (B, 1, embd_dim)), ref], axis=1) + position

    assert out.shape == (B, S, embd_dim)
    assert bool(jnp.all(jnp.isfinite(out)))
    # bf16 matmul inputs vs f32-HIGHEST reference -> loosened tolerance.
    assert bool(jnp.allclose(out, ref, atol=5e-2, rtol=5e-2)), \
        float(jnp.max(jnp.abs(out - ref)))
    print("KERNEL_OK")
</pallas_src>

<mosaic_0001>
module attributes {stable_mosaic.version = 11 : i64} {
  func.func @_embed_kernel(%arg0: i32, %arg1: memref<2x17x128xbf16, #tpu.memory_space<vmem>>, %arg2: memref<128x128xbf16, #tpu.memory_space<vmem>>, %arg3: memref<1x17x128xf32, #tpu.memory_space<vmem>>, %arg4: memref<2x17x128xf32, #tpu.memory_space<vmem>>) attributes {dimension_semantics = [#tpu.dimension_semantics<parallel>], iteration_bounds = array<i64: 1>, scalar_prefetch = 0 : i64, scratch_operands = 0 : i64, tpu.core_type = #tpu.core_type<tc>, window_params = [{transform_indices = @transform_0, window_bounds = array<i64: 2, 17, 128>}, {pipeline_mode = #tpu.pipeline_mode<synchronous>, transform_indices = @transform_1, window_bounds = array<i64: 128, 128>}, {pipeline_mode = #tpu.pipeline_mode<synchronous>, transform_indices = @transform_2, window_bounds = array<i64: 1, 17, 128>}, {transform_indices = @transform_3, window_bounds = array<i64: 2, 17, 128>}]} {
    %c0 = arith.constant 0 : index
    %c0_0 = arith.constant 0 : index
    %0 = vector.load %arg2[%c0, %c0_0] : memref<128x128xbf16, #tpu.memory_space<vmem>>, vector<128x128xbf16>
    %c0_1 = arith.constant 0 : index
    %c0_2 = arith.constant 0 : index
    %c0_3 = arith.constant 0 : index
    %1 = vector.load %arg3[%c0_1, %c0_2, %c0_3] : memref<1x17x128xf32, #tpu.memory_space<vmem>>, vector<1x17x128xf32>
    %2 = vector.shape_cast %1 : vector<1x17x128xf32> to vector<17x128xf32>
    %c0_4 = arith.constant 0 : index
    %c0_5 = arith.constant 0 : index
    %c0_6 = arith.constant 0 : index
    %3 = vector.load %arg1[%c0_4, %c0_5, %c0_6] : memref<2x17x128xbf16, #tpu.memory_space<vmem>>, vector<1x17x128xbf16>
    %4 = vector.shape_cast %3 : vector<1x17x128xbf16> to vector<17x128xbf16>
    %cst = arith.constant dense<0.000000e+00> : vector<17x128xf32>
    %5 = tpu.matmul %4, %0, %cst {dimension_numbers = #tpu.dot_dimension_numbers<[1], [0], [0], [1], [0, 0, 1, 1], [], []>} : vector<17x128xbf16>, vector<128x128xbf16>, vector<17x128xf32> -> vector<17x128xf32>
    %6 = arith.addf %5, %2 : vector<17x128xf32>
    %c0_7 = arith.constant 0 : index
    %c0_8 = arith.constant 0 : index
    %c0_9 = arith.constant 0 : index
    %7 = vector.load %arg4[%c0_7, %c0_8, %c0_9] : memref<2x17x128xf32, #tpu.memory_space<vmem>>, vector<1x17x128xf32>
    %8 = vector.shape_cast %7 : vector<1x17x128xf32> to vector<17x128xf32>
    %9 = vector.shape_cast %6 : vector<17x128xf32> to vector<1x17x128xf32>
    tpu.vector_store %arg4[%c0_7, %c0_8, %c0_9], %9 {strides = array<i32>} : memref<2x17x128xf32, #tpu.memory_space<vmem>>, vector<1x17x128xf32>,
    %c1 = arith.constant 1 : index
    %c0_10 = arith.constant 0 : index
    %c0_11 = arith.constant 0 : index
    %10 = vector.load %arg1[%c1, %c0_10, %c0_11] : memref<2x17x128xbf16, #tpu.memory_space<vmem>>, vector<1x17x128xbf16>
    %11 = vector.shape_cast %10 : vector<1x17x128xbf16> to vector<17x128xbf16>
    %cst_12 = arith.constant dense<0.000000e+00> : vector<17x128xf32>
    %12 = tpu.matmul %11, %0, %cst_12 {dimension_numbers = #tpu.dot_dimension_numbers<[1], [0], [0], [1], [0, 0, 1, 1], [], []>} : vector<17x128xbf16>, vector<128x128xbf16>, vector<17x128xf32> -> vector<17x128xf32>
    %13 = arith.addf %12, %2 : vector<17x128xf32>
    %c1_13 = arith.constant 1 : index
    %c0_14 = arith.constant 0 : index
    %c0_15 = arith.constant 0 : index
    %14 = vector.load %arg4[%c1_13, %c0_14, %c0_15] : memref<2x17x128xf32, #tpu.memory_space<vmem>>, vector<1x17x128xf32>
    %15 = vector.shape_cast %14 : vector<1x17x128xf32> to vector<17x128xf32>
    %16 = vector.shape_cast %13 : vector<17x128xf32> to vector<1x17x128xf32>
    tpu.vector_store %arg4[%c1_13, %c0_14, %c0_15], %16 {strides = array<i32>} : memref<2x17x128xf32, #tpu.memory_space<vmem>>, vector<1x17x128xf32>,
    return
  }
  func.func @transform_0(%arg0: i32) -> (i32, i32, i32) {
    %c0_i32 = arith.constant 0 : i32
    %c0_i32_0 = arith.constant 0 : i32
    %c0_i32_1 = arith.constant 0 : i32
    return %arg0, %c0_i32, %c0_i32_0 : i32, i32, i32
  }
  func.func @transform_1(%arg0: i32) -> (i32, i32) {
    %c0_i32 = arith.constant 0 : i32
    %c0_i32_0 = arith.constant 0 : i32
    %c0_i32_1 = arith.constant 0 : i32
    return %c0_i32, %c0_i32_0 : i32, i32
  }
  func.func @transform_2(%arg0: i32) -> (i32, i32, i32) {
    %c0_i32 = arith.constant 0 : i32
    %c0_i32_0 = arith.constant 0 : i32
    %c0_i32_1 = arith.constant 0 : i32
    %c0_i32_2 = arith.constant 0 : i32
    return %c0_i32, %c0_i32_0, %c0_i32_1 : i32, i32, i32
  }
  func.func @transform_3(%arg0: i32) -> (i32, i32, i32) {
    %c0_i32 = arith.constant 0 : i32
    %c0_i32_0 = arith.constant 0 : i32
    %c0_i32_1 = arith.constant 0 : i32
    return %arg0, %c0_i32, %c0_i32_0 : i32, i32, i32
  }
}

</mosaic_0001>

<llo_original>
// kernel: embd_forward.1
$region0: #{embd_forward.1}
  #allocation0 [shape = 'u32[]', space=smem, size = 0x4, offset = 0x4, fixed_abs, tag = 'smem constant byte address 0x4 - core index']
  #allocation1 [shape = 'u32[144,128]{1,0:T(1,128)}', space=vmem, size = 0x12000, scoped, tag = 'internal scratch']
  %s0 = inlined_call_operand.vmem [shape: bf16[2,17,128], index: 0, kind: input, shape index: {}]
  %s1 = inlined_call_operand.vmem [shape: bf16[128,128], index: 1, kind: input, shape index: {}]
  %s2 = inlined_call_operand.vmem [shape: f32[1,17,128], index: 2, kind: input, shape index: {}]
  %s3 = inlined_call_operand.vmem [shape: f32[2,17,128], index: 3, kind: output, shape index: {}]
  %s4 = sld [smem:[#allocation0]]
  $region22: #{embd_forward.1} parent=0
    _
  %s6 = ssub.s32 1, %s4
  %s7 = scalar_select 0, %s6, %s4
  // Predicated region
  $region2: #{embd_forward.1} parent=0 // pred_check
    _
  $region3: #{embd_forward.1} parent=0 // pred_check_branch
    %9 = sbr.rel (0) target = $region5
  $region4: #{embd_forward.1} parent=0 // pred_region
    _
  $region5: #{embd_forward.1} parent=0 // pred_fallthru
    _
  // Predicated region
  $region6: #{embd_forward.1} parent=0 // pred_check
    _
  $region7: #{embd_forward.1} parent=0 // pred_check_branch
    %11 = sbr.rel (0) target = $region9
  $region8: #{embd_forward.1} parent=0 // pred_region
    _
  $region9: #{embd_forward.1} parent=0 // pred_fallthru
    _
  // Predicated region
  $region10: #{embd_forward.1} parent=0 // pred_check
    _
  $region11: #{embd_forward.1} parent=0 // pred_check_branch
    %13 = sbr.rel (0) target = $region13
  $region12: #{embd_forward.1} parent=0 // pred_region
    _
  $region13: #{embd_forward.1} parent=0 // pred_fallthru
    _
  %v15 = vld [vmem:[%s1] sm:$0xf]
  %v16 = vld [vmem:[%s1 + $0x4] sm:$0xf]
  %v17 = vld [vmem:[%s1 + $0x8] sm:$0xf]
  %v18 = vld [vmem:[%s1 + $0xc] sm:$0xf]
  %v19 = vld [vmem:[%s1 + $0x10] sm:$0xf]
  %v20 = vld [vmem:[%s1 + $0x14] sm:$0xf]
  %v21 = vld [vmem:[%s1 + $0x18] sm:$0xf]
  %v22 = vld [vmem:[%s1 + $0x1c] sm:$0xf]
  %v23 = vld [vmem:[%s1 + $0x20] sm:$0xf]
  %v24 = vld [vmem:[%s1 + $0x24] sm:$0xf]
  %v25 = vld [vmem:[%s1 + $0x28] sm:$0xf]
  %v26 = vld [vmem:[%s1 + $0x2c] sm:$0xf]
  %v27 = vld [vmem:[%s1 + $0x30] sm:$0xf]
  %v28 = vld [vmem:[%s1 + $0x34] sm:$0xf]
  %v29 = vld [vmem:[%s1 + $0x38] sm:$0xf]
  %v30 = vld [vmem:[%s1 + $0x3c] sm:$0xf]
  %v31 = vld [vmem:[%s2] sm:$0xff]
  %v32 = vld [vmem:[%s2 + $0x8] sm:$0xff]
  %v33 = vld [vmem:[%s2 + $0x10] sm:$0x1]
  %v34 = vld [vmem:[%s0] sm:$0xf]
  %v35 = vld [vmem:[%s0 + $0x4] sm:$0xf]
  %v36 = vld [vmem:[%s0 + $0x8] sm:$0x1]
  %v40 = vunpack.c.l.b16 %v34
  %v41 = vunpack.c.l.b16 %v35
  %v42 = vunpack.c.l.b16 %v36
  %v43 = vpack.c.b16 %v41, %v40
  %v44 = vpack.c.b16 %v42, %v42
  %v63 = vunpack.c.l.b16 %v15
  %v64 = vunpack.c.l.b16 %v16
  %v65 = vunpack.c.l.b16 %v17
  %v66 = vunpack.c.l.b16 %v18
  %v67 = vunpack.c.l.b16 %v19
  %v68 = vunpack.c.l.b16 %v20
  %v69 = vunpack.c.l.b16 %v21
  %v70 = vunpack.c.l.b16 %v22
  %v71 = vunpack.c.l.b16 %v23
  %v72 = vunpack.c.l.b16 %v24
  %v73 = vunpack.c.l.b16 %v25
  %v74 = vunpack.c.l.b16 %v26
  %v75 = vunpack.c.l.b16 %v27
  %v76 = vunpack.c.l.b16 %v28
  %v77 = vunpack.c.l.b16 %v29
  %v78 = vunpack.c.l.b16 %v30
  %v79 = vpack.c.b16 %v64, %v63
  %v80 = vpack.c.b16 %v66, %v65
  %v81 = vpack.c.b16 %v68, %v67
  %v82 = vpack.c.b16 %v70, %v69
  %v83 = vpack.c.b16 %v72, %v71
  %v84 = vpack.c.b16 %v74, %v73
  %v85 = vpack.c.b16 %v76, %v75
  %v86 = vpack.c.b16 %v78, %v77
  %95 = vmatprep.subr.bf16.mxu0 0
  %96 = vmatpush1.bf16.msra.mxu0 %v79
  %97 = vmatprep.subr.bf16.mxu0 0
  %98 = vmatpush1.bf16.msra.mxu0 %v80
  %99 = vmatprep.subr.bf16.mxu0 0
  %100 = vmatpush1.bf16.msra.mxu0 %v81
  %101 = vmatprep.subr.bf16.mxu0 0
  %102 = vmatpush1.bf16.msra.mxu0 %v82
  %103 = vmatprep.subr.bf16.mxu0 0
  %104 = vmatpush1.bf16.msra.mxu0 %v83
  %105 = vmatprep.subr.bf16.mxu0 0
  %106 = vmatpush1.bf16.msra.mxu0 %v84
  %107 = vmatprep.subr.bf16.mxu0 0
  %108 = vmatpush1.bf16.msra.mxu0 %v85
  %109 = vmatprep.subr.bf16.mxu0 0
  %110 = vmatpush1.bf16.msra.mxu0 %v86
  %111 = vmatprep.subr.bf16.mxu0 0
  %112 = vmatpush1.bf16.msra.mxu0 0
  %113 = vmatprep.subr.bf16.mxu0 0
  %114 = vmatpush1.bf16.msra.mxu0 0
  %115 = vmatprep.subr.bf16.mxu0 0
  %116 = vmatpush1.bf16.msra.mxu0 0
  %117 = vmatprep.subr.bf16.mxu0 0
  %118 = vmatpush1.bf16.msra.mxu0 0
  %119 = vmatprep.subr.bf16.mxu0 0
  %120 = vmatpush1.bf16.msra.mxu0 0
  %121 = vmatprep.subr.bf16.mxu0 0
  %122 = vmatpush1.bf16.msra.mxu0 0
  %123 = vmatprep.subr.bf16.mxu0 0
  %124 = vmatpush1.bf16.msra.mxu0 0
  %125 = vmatprep.subr.bf16.mxu0 0
  %126 = vmatpush1.bf16.msra.mxu0 0
  %127 = vmatprep.mubr.bf16.mxu0 0
  %128 = vmatmul.mubr.bf16.gmra.mrb[0].mxu0 %v43
  %v129 = vpop.f32.mrb[0].mxu0
  %v130 = vadd.f32 %v31, %v129
  %v131 = vpop.f32.mrb[0].mxu0
  %v132 = vpop.f32.mrb[0].mxu0
  %v133 = vadd.f32 %v32, %v132
  %v134 = vpop.f32.mrb[0].mxu0
  %135 = vmatprep.mubr.bf16.mxu0 0
  %136 = vmatmul.mubr.bf16.gmra.mrb[0].mxu0 %v44
  %v137 = vpop.f32.mrb[0].mxu0
  %v138 = vadd.f32 %v33, %v137
  %v139 = vpop.f32.mrb[0].mxu0
  %v140 = vpop.f32.mrb[0].mxu0
  %v141 = vpop.f32.mrb[0].mxu0
  %142 = vdwg.mxu0
  %143 = vst [vmem:[%s3] sm:$0xff] %v130
  %144 = vst [vmem:[%s3 + $0x8] sm:$0xff] %v133
  %145 = vst [vmem:[%s3 + $0x10] sm:$0x1] %v138
  %s146 = scalar_lea.vmem %s0, 12
  %v147 = vld [vmem:[%s146] sm:$0xf]
  %v148 = vld [vmem:[%s146 + $0x4] sm:$0xf]
  %v149 = vld [vmem:[%s146 + $0x8] sm:$0x1]
  %v153 = vunpack.c.l.b16 %v147
  %v154 = vunpack.c.l.b16 %v148
  %v155 = vunpack.c.l.b16 %v149
  %v156 = vpack.c.b16 %v154, %v153
  %v157 = vpack.c.b16 %v155, %v155
  %160 = vmatprep.subr.bf16.mxu0 0
  %161 = vmatpush1.bf16.msra.mxu0 %v79
  %162 = vmatprep.subr.bf16.mxu0 0
  %163 = vmatpush1.bf16.msra.mxu0 %v80
  %164 = vmatprep.subr.bf16.mxu0 0
  %165 = vmatpush1.bf16.msra.mxu0 %v81
  %166 = vmatprep.subr.bf16.mxu0 0
  %167 = vmatpush1.bf16.msra.mxu0 %v82
  %168 = vmatprep.subr.bf16.mxu0 0
  %169 = vmatpush1.bf16.msra.mxu0 %v83
  %170 = vmatprep.subr.bf16.mxu0 0
  %171 = vmatpush1.bf16.msra.mxu0 %v84
  %172 = vmatprep.subr.bf16.mxu0 0
  %173 = vmatpush1.bf16.msra.mxu0 %v85
  %174 = vmatprep.subr.bf16.mxu0 0
  %175 = vmatpush1.bf16.msra.mxu0 %v86
  %176 = vmatprep.subr.bf16.mxu0 0
  %177 = vmatpush1.bf16.msra.mxu0 0
  %178 = vmatprep.subr.bf16.mxu0 0
  %179 = vmatpush1.bf16.msra.mxu0 0
  %180 = vmatprep.subr.bf16.mxu0 0
  %181 = vmatpush1.bf16.msra.mxu0 0
  %182 = vmatprep.subr.bf16.mxu0 0
  %183 = vmatpush1.bf16.msra.mxu0 0
  %184 = vmatprep.subr.bf16.mxu0 0
  %185 = vmatpush1.bf16.msra.mxu0 0
  %186 = vmatprep.subr.bf16.mxu0 0
  %187 = vmatpush1.bf16.msra.mxu0 0
  %188 = vmatprep.subr.bf16.mxu0 0
  %189 = vmatpush1.bf16.msra.mxu0 0
  %190 = vmatprep.subr.bf16.mxu0 0
  %191 = vmatpush1.bf16.msra.mxu0 0
  %192 = vmatprep.mubr.bf16.mxu0 0
  %193 = vmatmul.mubr.bf16.gmra.mrb[0].mxu0 %v156
  %v194 = vpop.f32.mrb[0].mxu0
  %v195 = vadd.f32 %v31, %v194
  %v196 = vpop.f32.mrb[0].mxu0
  %v197 = vpop.f32.mrb[0].mxu0
  %v198 = vadd.f32 %v32, %v197
  %v199 = vpop.f32.mrb[0].mxu0
  %200 = vmatprep.mubr.bf16.mxu0 0
  %201 = vmatmul.mubr.bf16.gmra.mrb[0].mxu0 %v157
  %v202 = vpop.f32.mrb[0].mxu0
  %v203 = vadd.f32 %v33, %v202
  %v204 = vpop.f32.mrb[0].mxu0
  %v205 = vpop.f32.mrb[0].mxu0
  %v206 = vpop.f32.mrb[0].mxu0
  %207 = vdwg.mxu0
  %s208 = scalar_lea.vmem %s3, 24
  %209 = vst [vmem:[%s208] sm:$0xff] %v195
  %210 = vst [vmem:[%s208 + $0x8] sm:$0xff] %v198
  %211 = vst [vmem:[%s208 + $0x10] sm:$0x1] %v203
  // Predicated region
  $region14: #{embd_forward.1} parent=0 // pred_check
    _
  $region15: #{embd_forward.1} parent=0 // pred_check_branch
    %213 = sbr.rel (0) target = $region17
  $region16: #{embd_forward.1} parent=0 // pred_region
    _
  $region17: #{embd_forward.1} parent=0 // pred_fallthru
    _
  // Predicated region
  $region18: #{embd_forward.1} parent=0 // pred_check
    _
  $region19: #{embd_forward.1} parent=0 // pred_check_branch
    %215 = sbr.rel (0) target = $region21
  $region20: #{embd_forward.1} parent=0 // pred_region
    _
  $region21: #{embd_forward.1} parent=0 // pred_fallthru
    _

</llo_original>
